<compile_context>
chip_gen: v6e
topology: v6e:2x2x1
jax: 0.10.0
libtpu: 0.0.40
codegen_flags: <defaults>
</compile_context>

<pallas_src>
import functools

import jax
import jax.numpy as jnp
from jax import lax
from jax.experimental import pallas as pl
from jax.experimental.pallas import tpu as pltpu

EPS = 1e-5            # nn.BatchNorm2d default eps
LANE = 128
SUBLANE = 8


def _round_up(x, m):
    return (x + m - 1) // m * m


def _elu(x):
    # ELU(alpha=1.0): x if x > 0 else exp(x) - 1   (expm1 -> EUP slot)
    return jnp.where(x > 0, x, jnp.expm1(jnp.minimum(x, 0.0)))


def _vmem_limit_bytes():
    """Chip-aware scoped-VMEM limit: capacity-16MiB clamped to [32,96] MiB."""
    try:
        cap = int(pltpu.get_tpu_info().vmem_capacity_bytes)
        return int(min(max(cap - (16 << 20), 32 << 20), 96 << 20))
    except Exception:
        return 48 * 1024 * 1024


# ---------------------------------------------------------------------------
# Pass A (stats only): y = xp @ W1 computed in VMEM; per-tile sum / sum-sq.
# Zero-padded rows of xp give zero rows of y -> no masking needed here.
def _conv1_stats_kernel(xp_ref, w1_ref, sum_ref, sq_ref):
    y = jnp.dot(xp_ref[...], w1_ref[...], preferred_element_type=jnp.float32)
    sum_ref[...] = jnp.sum(y, axis=0, keepdims=True).reshape(1, 1, -1)
    sq_ref[...] = jnp.sum(y * y, axis=0, keepdims=True).reshape(1, 1, -1)


# ---------------------------------------------------------------------------
# Pass B: recompute conv1, a = ELU(y*s1+t1), z = a @ W2.
# z stored compactly ([tile_m, Cout]); BN2 partial stats from the full-width
# f32 z.  Padded rows are masked out of the stats only on the last grid tile.
def _conv_block_stats_kernel(m_last, mask_last, xp_ref, w1_ref, s1_ref, t1_ref,
                             w2_ref, z_ref, sum_ref, sq_ref):
    y = jnp.dot(xp_ref[...], w1_ref[...], preferred_element_type=jnp.float32)
    a = _elu(y * s1_ref[...] + t1_ref[...])
    z = jnp.dot(a.astype(w2_ref.dtype), w2_ref[...],
                preferred_element_type=jnp.float32)
    z_ref[...] = z[:, : z_ref.shape[1]].astype(z_ref.dtype)
    sum_ref[...] = jnp.sum(z, axis=0, keepdims=True).reshape(1, 1, -1)
    sq_ref[...] = jnp.sum(z * z, axis=0, keepdims=True).reshape(1, 1, -1)
    if mask_last:
        # Only the final tile can contain padded rows; only the stats care.
        @pl.when(pl.program_id(0) == pl.num_programs(0) - 1)
        def _():
            row = lax.broadcasted_iota(jnp.int32, z.shape, 0)
            zm = jnp.where(row < m_last, z, 0.0)
            sum_ref[...] = jnp.sum(zm, axis=0, keepdims=True).reshape(1, 1, -1)
            sq_ref[...] = jnp.sum(zm * zm, axis=0, keepdims=True).reshape(1, 1, -1)


# ---------------------------------------------------------------------------
# Pass C: out = ELU(z * s2 + t2)   (pure streaming over compact [*, Cout])
def _bn2_elu_kernel(z_ref, s2_ref, t2_ref, o_ref):
    o_ref[...] = _elu(z_ref[...].astype(jnp.float32) * s2_ref[...]
                      + t2_ref[...]).astype(o_ref.dtype)


def _scale_shift(ssum, ssq, counts, m, gamma_p, beta_p):
    """Chan-style per-tile (mean, M2) combine -> folded BN scale/shift."""
    g, _, cp = ssum.shape
    s = ssum.reshape(g, cp)
    q = ssq.reshape(g, cp)
    n = counts.reshape(g, 1)
    mean_t = s / n
    m2_t = jnp.maximum(q - s * mean_t, 0.0)          # per-tile M2, clamped
    mean = jnp.sum(s, axis=0) / m
    m2 = jnp.sum(m2_t, axis=0) + jnp.sum(n * jnp.square(mean_t - mean), axis=0)
    var = m2 / m
    scale = gamma_p * lax.rsqrt(var + EPS)
    shift = beta_p - mean * scale
    return (scale.reshape(1, -1).astype(jnp.float32),
            shift.reshape(1, -1).astype(jnp.float32))


def encoder_block(x_nchw, params, *, compute_dtype=jnp.bfloat16, tile_m=4096,
                  out_dtype=jnp.float32):
    """x_nchw: [N, Cin, H, W] (H, W even). Returns [N, Cout, H/2, W/2]."""
    w1, b1, g1, be1, w2, b2, g2, be2 = params
    # b1/b2 intentionally unused: a per-channel bias before training-mode
    # BatchNorm is exactly cancelled by the mean subtraction.
    del b1, b2
    N, Cin, H, W = x_nchw.shape
    K1, Cout = w1.shape
    assert K1 == 4 * Cin and H % 2 == 0 and W % 2 == 0
    H2, W2 = H // 2, W // 2
    M = N * H2 * W2
    Cp = _round_up(Cout, LANE)        # matmul-operand padding only (VMEM side)

    # Patchify glue (one fused XLA pass): NCHW -> [M, 4*Cin], last axis
    # ordered (kh, kw, ci).  Matching weight layout: PyTorch W[Cout,Cin,2,2]
    # -> W.transpose(2,3,1,0).reshape(4*Cin, Cout).
    # TODO(synk): fold patchify / final NCHW transpose into kernel index_maps.
    xp = x_nchw.reshape(N, Cin, H2, 2, W2, 2)
    xp = jnp.transpose(xp, (0, 2, 4, 3, 5, 1)).reshape(M, K1)

    # ---- M-tile selection: big tiles (amortize ~0.35us/step), VMEM-aware ---
    tile_m = min(int(tile_m), max(256, (6 * 1024 * 1024) // (Cp * 4)))
    tile_m = max(SUBLANE, min(_round_up(tile_m, SUBLANE), _round_up(M, SUBLANE)))
    if M > SUBLANE and _round_up(M, tile_m) // tile_m < 2:
        # Keep >= 2 grid steps so ("parallel",) can use both v7x TensorCores.
        tile_m = max(SUBLANE, _round_up(pl.cdiv(M, 2), SUBLANE))
    Mp = _round_up(M, tile_m)
    G = Mp // tile_m
    if Mp > M:
        xp = jnp.pad(xp, ((0, Mp - M), (0, 0)))
    xp = xp.astype(compute_dtype)

    # Weights / BN params padded to Cp (VMEM matmul operands only). gamma/beta
    # padded with ZEROS so padded channels stay exactly 0 through BN+ELU.
    w1p = jnp.pad(w1, ((0, 0), (0, Cp - Cout))).astype(compute_dtype)
    w2p = jnp.pad(w2, ((0, Cp - Cout), (0, Cp - Cout))).astype(compute_dtype)
    g1p = jnp.pad(g1.reshape(-1).astype(jnp.float32), (0, Cp - Cout))
    be1p = jnp.pad(be1.reshape(-1).astype(jnp.float32), (0, Cp - Cout))
    g2p = jnp.pad(g2.reshape(-1).astype(jnp.float32), (0, Cp - Cout))
    be2p = jnp.pad(be2.reshape(-1).astype(jnp.float32), (0, Cp - Cout))

    cparams = pltpu.CompilerParams(
        dimension_semantics=("parallel",),
        vmem_limit_bytes=_vmem_limit_bytes())

    def row_spec(shape):
        return pl.BlockSpec(shape, lambda i: (i, 0))

    def rep_spec(shape):
        return pl.BlockSpec(shape, lambda i: (0, 0))

    def weight_spec(shape):
        # Constant block index -> never re-DMA'd; single-buffer big weights so
        # the second pipeline buffer doesn't eat v7x's 64 MiB VMEM.
        kwargs = {}
        if shape[0] * shape[1] * jnp.dtype(compute_dtype).itemsize >= (4 << 20):
            kwargs["pipeline_mode"] = pl.Buffered(1)
        return pl.BlockSpec(shape, lambda i: (0, 0), **kwargs)

    st_spec = pl.BlockSpec((1, 1, Cp), lambda i: (i, 0, 0))
    st_shape = jax.ShapeDtypeStruct((G, 1, Cp), jnp.float32)

    # True row count per tile (last tile may be partial).
    counts = (jnp.minimum((jnp.arange(G) + 1) * tile_m, M)
              - jnp.arange(G) * tile_m).astype(jnp.float32)

    # ---- Pass A: BN1 stats only (y never touches HBM) ----------------------
    s1sum, s1sq = pl.pallas_call(
        _conv1_stats_kernel,
        grid=(G,),
        in_specs=[row_spec((tile_m, K1)), weight_spec((K1, Cp))],
        out_specs=[st_spec, st_spec],
        out_shape=[st_shape, st_shape],
        compiler_params=cparams,
    )(xp, w1p)
    s1, t1 = _scale_shift(s1sum, s1sq, counts, M, g1p, be1p)

    # ---- Pass B: recompute conv1, BN1+ELU, conv2, compact z + BN2 stats ----
    m_last = M - (G - 1) * tile_m
    z, s2sum, s2sq = pl.pallas_call(
        functools.partial(_conv_block_stats_kernel, m_last, Mp > M),
        grid=(G,),
        in_specs=[row_spec((tile_m, K1)), weight_spec((K1, Cp)),
                  rep_spec((1, Cp)), rep_spec((1, Cp)), weight_spec((Cp, Cp))],
        out_specs=[row_spec((tile_m, Cout)), st_spec, st_spec],
        out_shape=[jax.ShapeDtypeStruct((Mp, Cout), compute_dtype),
                   st_shape, st_shape],
        compiler_params=cparams,
    )(xp, w1p, s1, t1, w2p)
    s2, t2 = _scale_shift(s2sum, s2sq, counts, M, g2p, be2p)

    # ---- Pass C: BN2+ELU streaming over compact z ---------------------------
    out = pl.pallas_call(
        _bn2_elu_kernel,
        grid=(G,),
        in_specs=[row_spec((tile_m, Cout)), rep_spec((1, Cout)), rep_spec((1, Cout))],
        out_specs=row_spec((tile_m, Cout)),
        out_shape=jax.ShapeDtypeStruct((Mp, Cout), out_dtype),
        compiler_params=cparams,
    )(z, s2[:, :Cout], t2[:, :Cout])

    out = out[:M].reshape(N, H2, W2, Cout)
    return jnp.transpose(out, (0, 3, 1, 2))          # back to NCHW


def encoder_block_reference(x_nchw, params):
    """Pure-JAX f32 reference with the PyTorch module's math (bias included)."""
    w1, b1, g1, be1, w2, b2, g2, be2 = params
    N, Cin, H, W = x_nchw.shape
    K1, Cout = w1.shape
    H2, W2 = H // 2, W // 2
    xp = x_nchw.reshape(N, Cin, H2, 2, W2, 2)
    xp = jnp.transpose(xp, (0, 2, 4, 3, 5, 1)).reshape(-1, K1)

    def bn(x, gamma, beta):
        mean = jnp.mean(x, axis=0)
        var = jnp.mean(jnp.square(x - mean), axis=0)   # biased batch variance
        return (x - mean) * lax.rsqrt(var + EPS) * gamma.reshape(-1) + beta.reshape(-1)

    y = jnp.dot(xp, w1, preferred_element_type=jnp.float32) + b1.reshape(-1)
    a = _elu(bn(y, g1, be1))
    z = jnp.dot(a, w2, preferred_element_type=jnp.float32) + b2.reshape(-1)
    o = _elu(bn(z, g2, be2))
    return jnp.transpose(o.reshape(N, H2, W2, Cout), (0, 3, 1, 2))


if __name__ == "__main__":
    def make_params(key, cin, cout):
        k_w1, k_b1, k_w2, k_b2, k_g1, k_g2 = jax.random.split(key, 6)
        w1 = jax.random.normal(k_w1, (4 * cin, cout), jnp.float32) * 0.1
        b1 = jax.random.normal(k_b1, (1, cout), jnp.float32) * 0.1
        g1 = 1.0 + 0.1 * jax.random.normal(k_g1, (1, cout), jnp.float32)
        be1 = jnp.full((1, cout), 0.05, jnp.float32)
        w2 = jax.random.normal(k_w2, (cout, cout), jnp.float32) * 0.1
        b2 = jax.random.normal(k_b2, (1, cout), jnp.float32) * 0.1
        g2 = 1.0 - 0.1 * jax.random.normal(k_g2, (1, cout), jnp.float32)
        be2 = jnp.full((1, cout), -0.05, jnp.float32)
        return (w1, b1, g1, be1, w2, b2, g2, be2)

    key = jax.random.PRNGKey(0)
    k1, k2, k3, k4 = jax.random.split(key, 4)

    # Case 1: N=2, Cin=4, H=W=16, Cout=8  -> M=128 rows (2 tiles, no padding).
    x1 = jax.random.normal(k1, (2, 4, 16, 16), jnp.float32)
    p1 = make_params(k2, 4, 8)
    ref1 = encoder_block_reference(x1, p1)

    out1_f32 = jax.block_until_ready(
        encoder_block(x1, p1, compute_dtype=jnp.float32))
    assert out1_f32.shape == (2, 8, 8, 8), out1_f32.shape
    assert jnp.allclose(out1_f32, ref1, atol=5e-4, rtol=5e-4), "case1 f32 mismatch"

    out1_bf16 = jax.block_until_ready(
        encoder_block(x1, p1, compute_dtype=jnp.bfloat16))
    assert jnp.allclose(out1_bf16, ref1, atol=5e-2, rtol=5e-2), "case1 bf16 mismatch"

    # Case 2: odd spatial -> M=90 rows: exercises row padding + the pl.when
    # masked-stats path on the last tile.
    x2 = jax.random.normal(k3, (2, 4, 18, 10), jnp.float32)
    p2 = make_params(k4, 4, 8)
    ref2 = encoder_block_reference(x2, p2)
    out2 = jax.block_until_ready(
        encoder_block(x2, p2, compute_dtype=jnp.float32))
    assert out2.shape == (2, 8, 9, 5), out2.shape
    assert jnp.allclose(out2, ref2, atol=5e-4, rtol=5e-4), "case2 f32 mismatch"

    print("KERNEL_OK")
</pallas_src>

<mosaic_0001>
module attributes {stable_mosaic.version = 11 : i64} {
  func.func @_conv1_stats_kernel(%arg0: i32, %arg1: memref<64x16xf32, #tpu.memory_space<vmem>>, %arg2: memref<16x128xf32, #tpu.memory_space<vmem>>, %arg3: memref<1x1x128xf32, #tpu.memory_space<vmem>>, %arg4: memref<1x1x128xf32, #tpu.memory_space<vmem>>) attributes {dimension_semantics = [#tpu.dimension_semantics<parallel>], iteration_bounds = array<i64: 2>, scalar_prefetch = 0 : i64, scratch_operands = 0 : i64, tpu.core_type = #tpu.core_type<tc>, window_params = [{transform_indices = @transform_0, window_bounds = array<i64: 64, 16>}, {pipeline_mode = #tpu.pipeline_mode<synchronous>, transform_indices = @transform_1, window_bounds = array<i64: 16, 128>}, {transform_indices = @transform_2, window_bounds = array<i64: 1, 1, 128>}, {transform_indices = @transform_3, window_bounds = array<i64: 1, 1, 128>}]} {
    %c0 = arith.constant 0 : index
    %c0_0 = arith.constant 0 : index
    %0 = vector.load %arg1[%c0, %c0_0] : memref<64x16xf32, #tpu.memory_space<vmem>>, vector<64x16xf32>
    %c0_1 = arith.constant 0 : index
    %c0_2 = arith.constant 0 : index
    %1 = vector.load %arg2[%c0_1, %c0_2] : memref<16x128xf32, #tpu.memory_space<vmem>>, vector<16x128xf32>
    %cst = arith.constant dense<0.000000e+00> : vector<64x128xf32>
    %2 = tpu.matmul %0, %1, %cst {dimension_numbers = #tpu.dot_dimension_numbers<[1], [0], [0], [1], [0, 0, 1, 1], [], []>} : vector<64x16xf32>, vector<16x128xf32>, vector<64x128xf32> -> vector<64x128xf32>
    %cst_3 = arith.constant dense<0.000000e+00> : vector<128xf32>
    %3 = vector.multi_reduction <add>, %2, %cst_3 [0] : vector<64x128xf32> to vector<128xf32>
    %4 = vector.shape_cast %3 : vector<128xf32> to vector<1x128xf32>
    %5 = vector.shape_cast %4 : vector<1x128xf32> to vector<1x1x128xf32>
    %c0_4 = arith.constant 0 : index
    %c0_5 = arith.constant 0 : index
    %c0_6 = arith.constant 0 : index
    %6 = vector.load %arg3[%c0_4, %c0_5, %c0_6] : memref<1x1x128xf32, #tpu.memory_space<vmem>>, vector<1x1x128xf32>
    tpu.vector_store %arg3[%c0_4, %c0_5, %c0_6], %5 {strides = array<i32>} : memref<1x1x128xf32, #tpu.memory_space<vmem>>, vector<1x1x128xf32>,
    %7 = arith.mulf %2, %2 : vector<64x128xf32>
    %cst_7 = arith.constant dense<0.000000e+00> : vector<128xf32>
    %8 = vector.multi_reduction <add>, %7, %cst_7 [0] : vector<64x128xf32> to vector<128xf32>
    %9 = vector.shape_cast %8 : vector<128xf32> to vector<1x128xf32>
    %10 = vector.shape_cast %9 : vector<1x128xf32> to vector<1x1x128xf32>
    %c0_8 = arith.constant 0 : index
    %c0_9 = arith.constant 0 : index
    %c0_10 = arith.constant 0 : index
    %11 = vector.load %arg4[%c0_8, %c0_9, %c0_10] : memref<1x1x128xf32, #tpu.memory_space<vmem>>, vector<1x1x128xf32>
    tpu.vector_store %arg4[%c0_8, %c0_9, %c0_10], %10 {strides = array<i32>} : memref<1x1x128xf32, #tpu.memory_space<vmem>>, vector<1x1x128xf32>,
    return
  }
  func.func @transform_0(%arg0: i32) -> (i32, i32) {
    %c0_i32 = arith.constant 0 : i32
    %c0_i32_0 = arith.constant 0 : i32
    return %arg0, %c0_i32 : i32, i32
  }
  func.func @transform_1(%arg0: i32) -> (i32, i32) {
    %c0_i32 = arith.constant 0 : i32
    %c0_i32_0 = arith.constant 0 : i32
    %c0_i32_1 = arith.constant 0 : i32
    return %c0_i32, %c0_i32_0 : i32, i32
  }
  func.func @transform_2(%arg0: i32) -> (i32, i32, i32) {
    %c0_i32 = arith.constant 0 : i32
    %c0_i32_0 = arith.constant 0 : i32
    %c0_i32_1 = arith.constant 0 : i32
    return %arg0, %c0_i32, %c0_i32_0 : i32, i32, i32
  }
  func.func @transform_3(%arg0: i32) -> (i32, i32, i32) {
    %c0_i32 = arith.constant 0 : i32
    %c0_i32_0 = arith.constant 0 : i32
    %c0_i32_1 = arith.constant 0 : i32
    return %arg0, %c0_i32, %c0_i32_0 : i32, i32, i32
  }
}

</mosaic_0001>

<llo_original>
// kernel: tpu_custom_call.1
$region0: #{tpu_custom_call.1}
  #allocation0 [shape = 'u32[]', space=smem, size = 0x4, offset = 0x4, fixed_abs, tag = 'smem constant byte address 0x4 - core index']
  #allocation1 [shape = 'u32[144,128]{1,0:T(1,128)}', space=vmem, size = 0x12000, scoped, tag = 'internal scratch']
  %s0 = inlined_call_operand.vmem [shape: f32[128,16], index: 0, kind: input, shape index: {}]
  %s1 = inlined_call_operand.vmem [shape: f32[16,128], index: 1, kind: input, shape index: {}]
  %s2 = inlined_call_operand.hbm [shape: f32[2,1,128], index: 2, kind: output, shape index: {0}]
  %s3 = inlined_call_operand.hbm [shape: f32[2,1,128], index: 3, kind: output, shape index: {1}]
  %4 = xla_tuple %s2, %s3
  %s5 = sld [smem:[#allocation0]]
  $region49: #{tpu_custom_call.1} parent=0
    _
  %s7 = ssub.s32 1, %s5
  %s8 = scalar_select 0, %s7, %s5
  $region1: #{tpu_custom_call.1} parent=0
    #allocation2 [shape = 'u8[1024]{0}', space=vmem, size = 0x400, scoped, tag = 'output window, operand 0']
    #allocation3 [shape = 's32[2]{0}', space=sflag, size = 0x8, scoped, tag = 'scoped memory for tpu_custom_call.1']
    #allocation4 [shape = 'u8[1024]{0}', space=vmem, size = 0x400, scoped, tag = 'output window, operand 1']
    #allocation5 [shape = 's32[2]{0}', space=sflag, size = 0x8, scoped, tag = 'scoped memory for tpu_custom_call.1']
    %9 = vsyncpa [#allocation3], 0
    %s10 = scalar_lea.sflag [#allocation3], 1
    %11 = vsyncpa %s10, 0
    %12 = vsyncpa [#allocation5], 0
    %s13 = scalar_lea.sflag [#allocation5], 1
    %14 = vsyncpa %s13, 0
    loop: start=0, step=1, limit=4
    $region2: #{tpu_custom_call.1} parent=1 // loop_pre_header
      _
    $region3: #{tpu_custom_call.1} parent=1 // loop_header
      %s16 = sphi 0, %s20
      %p17 = scmp.ge.s32.totalorder %s16, 4
      %s26 = sphi 0, %s28
      %s29 = sphi 0, %s26
      %s30 = sphi 0, %s29
      %s46 = sphi 0, %s30
      %s50 = sphi 0, %s50
      %s52 = sphi 0, %s50
      %s53 = sphi 0, %s52
      %s67 = sphi 0, %s53
      %s73 = sphi 0, %s75
      %s76 = sphi 0, %s73
      %s77 = sphi 0, %s76
      %s93 = sphi 0, %s77
      %s99 = sphi 0, %s101
      %s102 = sphi 0, %s99
      %s103 = sphi 0, %s102
      %s119 = sphi 0, %s103
    $region4: #{tpu_custom_call.1} parent=1 // loop_header_branch
      %19 = sbr.rel (%p17) target = $region8
    $region5: #{tpu_custom_call.1} parent=1 // loop_body
      %s21 = ssub.s32 %s16, 1
      %s22 = ssub.s32 %s16, 2
      %s23 = sadd.s32 %s16, 1
      %s24 = ssub.s32 %s16, %s23
      %p25 = scmp.eq.s32.totalorder %s24, 0
      %s27 = sadd.s32 %s26, 1
      %s28 = scalar_select %p25, %s26, %s27
      %p31 = pneg %p25
      %p32 = scmp.eq.s32.totalorder %s16, 1
      %p33 = por %p31, %p32
      %p34 = scmp.ne.s32.totalorder %s26, %s29
      %p35 = scmp.eq.s32.totalorder %s16, 0
      %p36 = por %p34, %p35
      %p37 = scmp.ne.s32.totalorder %s26, %s29
      %p38 = scmp.eq.s32.totalorder %s21, 1
      %p39 = por %p37, %p38
      %p40 = scmp.ne.s32.totalorder %s29, %s30
      %p41 = scmp.eq.s32.totalorder %s21, 0
      %p42 = por %p40, %p41
      %p43 = scmp.ne.s32.totalorder %s29, %s30
      %p44 = scmp.eq.s32.totalorder %s22, 1
      %p45 = por %p43, %p44
      %p47 = scmp.ne.s32.totalorder %s30, %s46
      %p48 = scmp.eq.s32.totalorder %s22, 0
      %p49 = por %p47, %p48
      %s51 = sadd.s32 %s50, 1
      %p54 = scmp.eq.s32.totalorder %s16, 1
      %p55 = scmp.ne.s32.totalorder %s50, %s52
      %p56 = scmp.eq.s32.totalorder %s16, 0
      %p57 = por %p55, %p56
      %p58 = scmp.ne.s32.totalorder %s50, %s52
      %p59 = scmp.eq.s32.totalorder %s21, 1
      %p60 = por %p58, %p59
      %p61 = scmp.ne.s32.totalorder %s52, %s53
      %p62 = scmp.eq.s32.totalorder %s21, 0
      %p63 = por %p61, %p62
      %p64 = scmp.ne.s32.totalorder %s52, %s53
      %p65 = scmp.eq.s32.totalorder %s22, 1
      %p66 = por %p64, %p65
      %p68 = scmp.ne.s32.totalorder %s53, %s67
      %p69 = scmp.eq.s32.totalorder %s22, 0
      %p70 = por %p68, %p69
      %s71 = ssub.s32 %s16, %s23
      %p72 = scmp.eq.s32.totalorder %s71, 0
      %s74 = sadd.s32 %s73, 1
      %s75 = scalar_select %p72, %s73, %s74
      %p78 = pneg %p72
      %p79 = scmp.eq.s32.totalorder %s16, 1
      %p80 = por %p78, %p79
      %p81 = scmp.ne.s32.totalorder %s73, %s76
      %p82 = scmp.eq.s32.totalorder %s16, 0
      %p83 = por %p81, %p82
      %p84 = scmp.ne.s32.totalorder %s73, %s76
      %p85 = scmp.eq.s32.totalorder %s21, 1
      %p86 = por %p84, %p85
      %p87 = scmp.ne.s32.totalorder %s76, %s77
      %p88 = scmp.eq.s32.totalorder %s21, 0
      %p89 = por %p87, %p88
      %p90 = scmp.ne.s32.totalorder %s76, %s77
      %p91 = scmp.eq.s32.totalorder %s22, 1
      %p92 = por %p90, %p91
      %p94 = scmp.ne.s32.totalorder %s77, %s93
      %p95 = scmp.eq.s32.totalorder %s22, 0
      %p96 = por %p94, %p95
      %s97 = ssub.s32 %s16, %s23
      %p98 = scmp.eq.s32.totalorder %s97, 0
      %s100 = sadd.s32 %s99, 1
      %s101 = scalar_select %p98, %s99, %s100
      %p104 = pneg %p98
      %p105 = scmp.eq.s32.totalorder %s16, 1
      %p106 = por %p104, %p105
      %p107 = scmp.ne.s32.totalorder %s99, %s102
      %p108 = scmp.eq.s32.totalorder %s16, 0
      %p109 = por %p107, %p108
      %p110 = scmp.ne.s32.totalorder %s99, %s102
      %p111 = scmp.eq.s32.totalorder %s21, 1
      %p112 = por %p110, %p111
      %p113 = scmp.ne.s32.totalorder %s102, %s103
      %p114 = scmp.eq.s32.totalorder %s21, 0
      %p115 = por %p113, %p114
      %p116 = scmp.ne.s32.totalorder %s102, %s103
      %p117 = scmp.eq.s32.totalorder %s22, 1
      %p118 = por %p116, %p117
      %p120 = scmp.ne.s32.totalorder %s103, %s119
      %p121 = scmp.eq.s32.totalorder %s22, 0
      %p122 = por %p120, %p121
      %p123 = scmp.le.s32.totalorder 1, %s16
      %p124 = scmp.lt.s32.totalorder %s16, 3
      %p125 = pnand %p123, %p124
      %p126 = pneg %p125
      // Predicated region
      $region9: #{tpu_custom_call.1} parent=5 // pred_check
        _
      $region10: #{tpu_custom_call.1} parent=5 // pred_check_branch
        %128 = sbr.rel (%p125) target = $region12
      $region11: #{tpu_custom_call.1} parent=5 // pred_region
        %s129 = ssub.s32 %s16, 1
        // Predicated region
        $region13: #{tpu_custom_call.1} parent=11 // pred_check
          %p130 = pneg %p63
        $region14: #{tpu_custom_call.1} parent=11 // pred_check_branch
          %132 = sbr.rel (%p130) target = $region16
        $region15: #{tpu_custom_call.1} parent=11 // pred_region
          _
        $region16: #{tpu_custom_call.1} parent=11 // pred_fallthru
          _
      $region12: #{tpu_custom_call.1} parent=5 // pred_fallthru
        _
      %p133 = scmp.lt.s32.totalorder %s16, 2
      // Predicated region
      $region17: #{tpu_custom_call.1} parent=5 // pred_check
        %p134 = pneg %p133
      $region18: #{tpu_custom_call.1} parent=5 // pred_check_branch
        %136 = sbr.rel (%p134) target = $region20
      $region19: #{tpu_custom_call.1} parent=5 // pred_region
        // Predicated region
        $region21: #{tpu_custom_call.1} parent=19 // pred_check
          %p137 = pneg %p36
        $region22: #{tpu_custom_call.1} parent=19 // pred_check_branch
          %139 = sbr.rel (%p137) target = $region24
        $region23: #{tpu_custom_call.1} parent=19 // pred_region
          %s140 = smul.u32 8, %s16
          %p141 = scmp.lt.s32.totalorder %s140, 15
          %s142 = scalar_select %p141, %s140, 15
          %s143 = smul.addr %s142, 8
          %s144 = scalar_lea.vmem %s0, %s143
          %s145 = smul.u32 8, %s16
        $region24: #{tpu_custom_call.1} parent=19 // pred_fallthru
          _
      $region20: #{tpu_custom_call.1} parent=5 // pred_fallthru
        _
      %p146 = scmp.le.s32.totalorder 1, %s16
      %p147 = scmp.lt.s32.totalorder %s16, 3
      %p148 = pnand %p146, %p147
      %p149 = pneg %p148
      // Predicated region
      $region25: #{tpu_custom_call.1} parent=5 // pred_check
        _
      $region26: #{tpu_custom_call.1} parent=5 // pred_check_branch
        %151 = sbr.rel (%p148) target = $region28
      $region27: #{tpu_custom_call.1} parent=5 // pred_region
        %s152 = ssub.s32 %s16, 1
        %s153 = smul.u32 8, %s21
        %p154 = scmp.lt.s32.totalorder %s153, 15
        %s155 = scalar_select %p154, %s153, 15
        %s156 = smul.addr %s155, 8
        %s157 = scalar_lea.vmem %s0, %s156
        %p158 = pneg %p42
        %p159 = pneg %p39
        %p160 = pneg %p63
        %p161 = pneg %p60
        %p162 = pneg %p89
        %p163 = pneg %p86
        %s164 = sand.u32 %s76, 1
        %s165 = scalar_lea.sflag [#allocation3], %s164
        %s166 = sand.u32 %s76, 1
        %s167 = scalar_lea.vmem [#allocation2], %s166
        %p168 = pneg %p115
        %p169 = pneg %p112
        %s170 = sand.u32 %s102, 1
        %s171 = scalar_lea.sflag [#allocation5], %s170
        %s172 = sand.u32 %s102, 1
        %s173 = scalar_lea.vmem [#allocation4], %s172
        %s174 = smul.u32 8, %s21
        %p175 = scmp.lt.s32.totalorder %s174, 15
        %s176 = scalar_select %p175, %s174, 15
        %s177 = smul.addr %s176, 8
        %s178 = scalar_lea.vmem %s0, %s177
        %s179 = smul.u32 8, %s21
        %v180 = vld [vmem:[%s178] sm:$0xff]
        %v181 = vld [vmem:[%s178 + $0x8] sm:$0xff]
        %v182 = vld [vmem:[%s178 + $0x10] sm:$0xff]
        %v183 = vld [vmem:[%s178 + $0x18] sm:$0xff]
        %v184 = vld [vmem:[%s178 + $0x20] sm:$0xff]
        %v185 = vld [vmem:[%s178 + $0x28] sm:$0xff]
        %v186 = vld [vmem:[%s178 + $0x30] sm:$0xff]
        %v187 = vld [vmem:[%s178 + $0x38] sm:$0xff]
        %v188 = vld [vmem:[%s1] sm:$0xff]
        %v189 = vld [vmem:[%s1 + $0x8] sm:$0xff]
        %vm190 = vcmask 130048
        %v192 = vsel %vm190, %v180, 0
        %v195 = vsel %vm190, %v181, 0
        %v198 = vsel %vm190, %v182, 0
        %v201 = vsel %vm190, %v183, 0
        %v204 = vsel %vm190, %v184, 0
        %v207 = vsel %vm190, %v185, 0
        %v210 = vsel %vm190, %v186, 0
        %v213 = vsel %vm190, %v187, 0
        %215 = vmatprep.subr.mxu0 0.0
        %216 = vmatpush1.msra.mxu0 0.0
        %217 = vmatprep.subr.mxu0 0.0
        %218 = vmatpush1.msra.mxu0 0.0
        %219 = vmatprep.subr.mxu0 0.0
        %220 = vmatpush1.msra.mxu0 0.0
        %221 = vmatprep.subr.mxu0 0.0
        %222 = vmatpush1.msra.mxu0 0.0
        %223 = vmatprep.subr.mxu0 0.0
        %224 = vmatpush1.msra.mxu0 0.0
        %225 = vmatprep.subr.mxu0 0.0
        %226 = vmatpush1.msra.mxu0 0.0
        %227 = vmatprep.subr.mxu0 0.0
        %228 = vmatpush1.msra.mxu0 0.0
        %229 = vmatprep.subr.mxu0 0.0
        %230 = vmatpush1.msra.mxu0 0.0
        %231 = vmatprep.subr.mxu0 0.0
        %232 = vmatpush1.msra.mxu0 0.0
        %233 = vmatprep.subr.mxu0 0.0
        %234 = vmatpush1.msra.mxu0 0.0
        %235 = vmatprep.subr.mxu0 0.0
        %236 = vmatpush1.msra.mxu0 0.0
        %237 = vmatprep.subr.mxu0 0.0
        %238 = vmatpush1.msra.mxu0 0.0
        %239 = vmatprep.subr.mxu0 0.0
        %240 = vmatpush1.msra.mxu0 0.0
        %241 = vmatprep.subr.mxu0 0.0
        %242 = vmatpush1.msra.mxu0 0.0
        %243 = vmatprep.subr.mxu0 0.0
        %244 = vmatpush1.msra.mxu0 %v189
        %245 = vmatprep.subr.mxu0 0.0
        %246 = vmatpush1.msra.mxu0 %v188
        %247 = vmatprep.subr.mxu0 0.0
        %248 = vmatpush2.msra.mxu0 0.0
        %249 = vmatprep.subr.mxu0 0.0
        %250 = vmatpush2.msra.mxu0 0.0
        %251 = vmatprep.subr.mxu0 0.0
        %252 = vmatpush2.msra.mxu0 0.0
        %253 = vmatprep.subr.mxu0 0.0
        %254 = vmatpush2.msra.mxu0 0.0
        %255 = vmatprep.subr.mxu0 0.0
        %256 = vmatpush2.msra.mxu0 0.0
        %257 = vmatprep.subr.mxu0 0.0
        %258 = vmatpush2.msra.mxu0 0.0
        %259 = vmatprep.subr.mxu0 0.0
        %260 = vmatpush2.msra.mxu0 0.0
        %261 = vmatprep.subr.mxu0 0.0
        %262 = vmatpush2.msra.mxu0 0.0
        %263 = vmatprep.subr.mxu0 0.0
        %264 = vmatpush2.msra.mxu0 0.0
        %265 = vmatprep.subr.mxu0 0.0
        %266 = vmatpush2.msra.mxu0 0.0
        %267 = vmatprep.subr.mxu0 0.0
        %268 = vmatpush2.msra.mxu0 0.0
        %269 = vmatprep.subr.mxu0 0.0
        %270 = vmatpush2.msra.mxu0 0.0
        %271 = vmatprep.subr.mxu0 0.0
        %272 = vmatpush2.msra.mxu0 0.0
        %273 = vmatprep.subr.mxu0 0.0
        %274 = vmatpush2.msra.mxu0 0.0
        %275 = vmatprep.subr.mxu0 0.0
        %276 = vmatpush2.msra.mxu0 0.0
        %277 = vmatprep.subr.mxu0 0.0
        %278 = vmatpush2.msra.mxu0 0.0
        %279 = vmatprep.mubr.f32.mxu0 0.0
        %280 = vmatmul.mubr.f32.gmra.mxu0 %v192
        %v281 = vpop.f32.mrf.mxu0
        %v282 = vadd.f32 0.0, %v281
        %v283 = vpop.f32.mrf.mxu0
        %284 = vmatprep.mubr.f32.mxu0 0.0
        %285 = vmatmul.mubr.f32.gmra.mxu0 %v195
        %v286 = vpop.f32.mrf.mxu0
        %v287 = vadd.f32 0.0, %v286
        %v288 = vpop.f32.mrf.mxu0
        %289 = vmatprep.mubr.f32.mxu0 0.0
        %290 = vmatmul.mubr.f32.gmra.mxu0 %v198
        %v291 = vpop.f32.mrf.mxu0
        %v292 = vadd.f32 0.0, %v291
        %v293 = vpop.f32.mrf.mxu0
        %294 = vmatprep.mubr.f32.mxu0 0.0
        %295 = vmatmul.mubr.f32.gmra.mxu0 %v201
        %v296 = vpop.f32.mrf.mxu0
        %v297 = vadd.f32 0.0, %v296
        %v298 = vpop.f32.mrf.mxu0
        %299 = vmatprep.mubr.f32.mxu0 0.0
        %300 = vmatmul.mubr.f32.gmra.mxu0 %v204
        %v301 = vpop.f32.mrf.mxu0
        %v302 = vadd.f32 0.0, %v301
        %v303 = vpop.f32.mrf.mxu0
        %304 = vmatprep.mubr.f32.mxu0 0.0
        %305 = vmatmul.mubr.f32.gmra.mxu0 %v207
        %v306 = vpop.f32.mrf.mxu0
        %v307 = vadd.f32 0.0, %v306
        %v308 = vpop.f32.mrf.mxu0
        %309 = vmatprep.mubr.f32.mxu0 0.0
        %310 = vmatmul.mubr.f32.gmra.mxu0 %v210
        %v311 = vpop.f32.mrf.mxu0
        %v312 = vadd.f32 0.0, %v311
        %v313 = vpop.f32.mrf.mxu0
        %314 = vmatprep.mubr.f32.mxu0 0.0
        %315 = vmatmul.mubr.f32.gmra.mxu0 %v213
        %v316 = vpop.f32.mrf.mxu0
        %v317 = vadd.f32 0.0, %v316
        %v318 = vpop.f32.mrf.mxu0
        %319 = vdwg.mxu0
        %v320 = vadd.f32 %v282, %v287
        %v321 = vadd.f32 %v320, %v292
        %v322 = vadd.f32 %v321, %v297
        %v323 = vadd.f32 %v322, %v302
        %v324 = vadd.f32 %v323, %v307
        %v325 = vadd.f32 %v324, %v312
        %v326 = vadd.f32 %v325, %v317
        %v327 = vrot.slane %v326, 4
        %v328 = vadd.f32 %v326, %v327
        %v329 = vrot.slane %v328, 2
        %v330 = vadd.f32 %v328, %v329
        %v331 = vrot.slane %v330, 1
        %v332 = vadd.f32 %v330, %v331
        %333 = vst [vmem:[%s167] sm:$0x1] %v332
        %v334 = vmul.f32 %v282, %v282
        %v335 = vmul.f32 %v287, %v287
        %v336 = vmul.f32 %v292, %v292
        %v337 = vmul.f32 %v297, %v297
        %v338 = vmul.f32 %v302, %v302
        %v339 = vmul.f32 %v307, %v307
        %v340 = vmul.f32 %v312, %v312
        %v341 = vmul.f32 %v317, %v317
        %v342 = vadd.f32 %v334, %v335
        %v343 = vadd.f32 %v342, %v336
        %v344 = vadd.f32 %v343, %v337
        %v345 = vadd.f32 %v344, %v338
        %v346 = vadd.f32 %v345, %v339
        %v347 = vadd.f32 %v346, %v340
        %v348 = vadd.f32 %v347, %v341
        %v349 = vrot.slane %v348, 4
        %v350 = vadd.f32 %v348, %v349
        %v351 = vrot.slane %v350, 2
        %v352 = vadd.f32 %v350, %v351
        %v353 = vrot.slane %v352, 1
        %v354 = vadd.f32 %v352, %v353
        %355 = vst [vmem:[%s173] sm:$0x1] %v354
        %s356 = sand.u32 %s76, 1
        %s357 = scalar_lea.sflag [#allocation3], %s356
        %s358 = sand.u32 %s76, 1
        %s359 = scalar_lea.vmem [#allocation2], %s358
        %s360 = sand.u32 %s102, 1
        %s361 = scalar_lea.sflag [#allocation5], %s360
        %s362 = sand.u32 %s102, 1
        %s363 = scalar_lea.vmem [#allocation4], %s362
        // Predicated region
        $region29: #{tpu_custom_call.1} parent=27 // pred_check
          %p364 = pneg %p86
        $region30: #{tpu_custom_call.1} parent=27 // pred_check_branch
          %366 = sbr.rel (%p364) target = $region32
        $region31: #{tpu_custom_call.1} parent=27 // pred_region
          %s368 = ssub.s32 16, 16
          %369 = vsyncadd %s357, %s368
          %s370 = smul.addr %s21, 16
          %s371 = scalar_lea.hbm %s2, %s370
          %s373 = sshll.u32 %s359, 4
          %s374 = int_to_ptr.vmem [resolvable:$true] %s373
          %376 = dma.vmem_to_hbm [thread:$0]  %s374, 16, %s371, %s357
        $region32: #{tpu_custom_call.1} parent=27 // pred_fallthru
          _
        // Predicated region
        $region33: #{tpu_custom_call.1} parent=27 // pred_check
          %p377 = pneg %p112
        $region34: #{tpu_custom_call.1} parent=27 // pred_check_branch
          %379 = sbr.rel (%p377) target = $region36
        $region35: #{tpu_custom_call.1} parent=27 // pred_region
          %s381 = ssub.s32 16, 16
          %382 = vsyncadd %s361, %s381
          %s383 = smul.addr %s21, 16
          %s384 = scalar_lea.hbm %s3, %s383
          %s386 = sshll.u32 %s363, 4
          %s387 = int_to_ptr.vmem [resolvable:$true] %s386
          %389 = dma.vmem_to_hbm [thread:$0]  %s387, 16, %s384, %s361
        $region36: #{tpu_custom_call.1} parent=27 // pred_fallthru
          _
      $region28: #{tpu_custom_call.1} parent=5 // pred_fallthru
        _
      %p390 = scmp.le.s32.totalorder 2, %s16
      // Predicated region
      $region37: #{tpu_custom_call.1} parent=5 // pred_check
        %p391 = pneg %p390
      $region38: #{tpu_custom_call.1} parent=5 // pred_check_branch
        %393 = sbr.rel (%p391) target = $region40
      $region39: #{tpu_custom_call.1} parent=5 // pred_region
        %s394 = ssub.s32 %s16, 2
        // Predicated region
        $region41: #{tpu_custom_call.1} parent=39 // pred_check
          %p395 = pneg %p92
        $region42: #{tpu_custom_call.1} parent=39 // pred_check_branch
          %397 = sbr.rel (%p395) target = $region44
        $region43: #{tpu_custom_call.1} parent=39 // pred_region
          %s398 = sand.u32 %s77, 1
          %s399 = scalar_lea.sflag [#allocation3], %s398
          %s400 = sand.u32 %s77, 1
          %s401 = scalar_lea.vmem [#allocation2], %s400
          %402 = dma.done %s399, 16
        $region44: #{tpu_custom_call.1} parent=39 // pred_fallthru
          _
        // Predicated region
        $region45: #{tpu_custom_call.1} parent=39 // pred_check
          %p403 = pneg %p118
        $region46: #{tpu_custom_call.1} parent=39 // pred_check_branch
          %405 = sbr.rel (%p403) target = $region48
        $region47: #{tpu_custom_call.1} parent=39 // pred_region
          %s406 = sand.u32 %s103, 1
          %s407 = scalar_lea.sflag [#allocation5], %s406
          %s408 = sand.u32 %s103, 1
          %s409 = scalar_lea.vmem [#allocation4], %s408
          %410 = dma.done %s407, 16
        $region48: #{tpu_custom_call.1} parent=39 // pred_fallthru
          _
      $region40: #{tpu_custom_call.1} parent=5 // pred_fallthru
        _
    $region6: #{tpu_custom_call.1} parent=1 // loop_footer
      %s20 = sadd.s32 1, %s16
    $region7: #{tpu_custom_call.1} parent=1 // loop_footer_branch
      %15 = sbr.rel target = $region3
    $region8: #{tpu_custom_call.1} parent=1 // loop_exit
      _
    %411 = vsyncpa [#allocation3], 1
    %s412 = scalar_lea.sflag [#allocation3], 1
    %413 = vsyncpa %s412, 1
    %414 = vsyncpa [#allocation5], 1
    %s415 = scalar_lea.sflag [#allocation5], 1
    %416 = vsyncpa %s415, 1

</llo_original>
